<compile_context>
chip_gen: v7x
topology: tpu7x:2x2x1
jax: 0.10.0
libtpu: 0.0.40
codegen_flags: <defaults>
</compile_context>

<pallas_src>
import math

import jax
import jax.numpy as jnp
from jax.experimental import pallas as pl
from jax.experimental.pallas import tpu as pltpu


def _gnn_message_kernel(msg_ref, type_ref, adj_ref,
                        w1_ref, b1_ref, w2_ref, b2_ref,
                        wout_ref, idx_ref, win_ref, bin_ref, scal_ref,
                        out_ref):
    """One grid step processes TB batch elements, packed along lanes.

    msg_ref : (M, TB*H) f32  message features, column b*H+h = (batch b, feat h)
    type_ref: (M, H)    f32  gathered type embeddings (shipped once)
    adj_ref : (M, M)    mxu  var->check adjacency (0/1 -> exact in bf16)
    w1_ref  : (2H, H)   mxu  Linear(2H->H) weight^T
    b1_ref  : (1, H)    f32
    w2_ref  : (H, H)    mxu  Linear(H->H) weight^T
    b2_ref  : (1, H)    f32
    wout_ref: (1, H)    f32  output-projection weight row (used on the VPU)
    idx_ref : (M, K)    i32  check_index_tensor (-1 = invalid)
    win_ref : (1, H)    f32  input_embedding (Linear(1->H)) weight^T
    bin_ref : (1, H)    f32  input_embedding bias
    scal_ref: SMEM (2,) f32  [alpha, output-projection bias]
    out_ref : (M, TB*H) f32  updated message features (same packing as msg_ref)
    """
    M = adj_ref.shape[0]
    H = w2_ref.shape[0]
    TB = msg_ref.shape[1] // H
    K = idx_ref.shape[1]
    mxu = w1_ref.dtype                     # MXU operand dtype chosen by wrapper

    alpha = scal_ref[0]
    bout = scal_ref[1]

    # type-embedding add (f32 VPU); the (M, H) table is lane-tiled in-kernel.
    type_tiled = jnp.concatenate([type_ref[...]] * TB, axis=1)          # (M, TB*H)
    combined = msg_ref[...] + type_tiled
    combined_m = combined.astype(mxu)

    # var -> check aggregation: ONE MXU dot with the batch packed along N.
    v2c = jnp.dot(adj_ref[...], combined_m,
                  preferred_element_type=jnp.float32)                   # (M, TB*H)

    # var_to_check_update MLP + output projection, per batch lane-slab.
    h2_slabs, llr_cols = [], []
    for b in range(TB):                                                  # static unroll
        lo = b * H
        x = jnp.concatenate([combined_m[:, lo:lo + H],
                             v2c[:, lo:lo + H].astype(mxu)], axis=1)     # (M, 2H)
        h1 = jnp.maximum(
            jnp.dot(x, w1_ref[...], preferred_element_type=jnp.float32)
            + b1_ref[...], 0.0)
        h2 = (jnp.dot(h1.astype(mxu), w2_ref[...],
                      preferred_element_type=jnp.float32) + b2_ref[...])  # (M, H) f32
        h2_slabs.append(h2)
        # output projection as VPU multiply + cross-lane (XLU) sum — no N=1 matmul
        llr_cols.append(jnp.sum(h2 * wout_ref[...], axis=-1, keepdims=True) + bout)

    llr_mat = jnp.concatenate(llr_cols, axis=1)                          # (M, TB) f32
    llr_m = llr_mat.astype(mxu)

    # min-sum check update: per-k one-hot gather (never the full (K*M, M)
    # selector), dotted against the batched LLR matrix (N = TB); the K-way
    # min/abs/sign reduction is vectorized across the batch columns.
    col_ids = jax.lax.broadcasted_iota(jnp.int32, (M, M), 1)             # hoisted
    min_abs = None
    sign_prod = None
    for k in range(K):                                                   # K is small
        onehot_k = (col_ids == idx_ref[:, k:k + 1]).astype(mxu)          # (M, M)
        sel = jnp.dot(onehot_k, llr_m,
                      preferred_element_type=jnp.float32)                # (M, TB)
        a = jnp.abs(sel)
        a = jnp.where(a == 0.0, 1e10, a)            # invalid (-1) / exact-zero entries
        s = jnp.where(sel + 1e-10 < 0.0, -1.0, 1.0)  # running +/-1 product, no fmod
        min_abs = a if min_abs is None else jnp.minimum(min_abs, a)
        sign_prod = s if sign_prod is None else sign_prod * s
    check_llr = alpha * min_abs * sign_prod                              # (M, TB)

    # input_embedding (Linear(1->H)) + residual, written lane-dense in one store.
    out_slabs = [h2_slabs[b] + check_llr[:, b:b + 1] * win_ref[...] + bin_ref[...]
                 for b in range(TB)]
    out_ref[...] = jnp.concatenate(out_slabs, axis=1)


# --------------------------------------------------------------------------- #
#  tiling / VMEM heuristics
# --------------------------------------------------------------------------- #

def _vmem_capacity_bytes():
    try:
        info = pltpu.get_tpu_info()
        for attr in ("vmem_capacity_bytes", "vmem_bytes", "vmem_size_bytes"):
            v = getattr(info, attr, None)
            if v:
                return int(v)
    except Exception:
        pass
    return 64 * 1024 * 1024          # conservative default: v7x per-core VMEM


def _lane_quantum(hidden_dim):
    # smallest TB such that a (., TB*H) block is a whole number of 128-lane vregs
    return 128 // math.gcd(128, hidden_dim)


def _vmem_estimate(tb, M, H, K, mxu_bytes):
    fixed = (3 * M * M * mxu_bytes            # adjacency (double-buffered) + one-hot temp
             + 2 * (M * H + M * K) * 4        # type table + index table
             + 2 * (3 * H * H + 8 * H) * 4    # MLP / embedding weights + biases
             + (1 << 20))                     # slack for compiler temps
    per_tb = (4 * M * H * 4                   # msg/out blocks, double-buffered
              + 12 * M * H * 4)               # combined / v2c / x / h1 / h2 / out temps
    return fixed + per_tb * tb


def _choose_batch_tile(B, M, H, K, vmem_budget, mxu_bytes):
    q = _lane_quantum(H)
    if B <= q:
        return B                              # one block covering the whole (tiny) batch
    per_tb = 16 * M * H * 4
    headroom = vmem_budget - _vmem_estimate(0, M, H, K, mxu_bytes)
    tb_fit = max(q, (headroom // per_tb // q) * q)
    tb_grid2 = max(q, (-(-B // (2 * q))) * q)      # keep grid >= 2 (v7x has 2 TCs)
    tb_cap = max(q, (max(1, 512 // H) // q) * q)   # TB*H ~ 2x MXU width saturates N
    return int(min(tb_fit, tb_grid2, tb_cap))


# --------------------------------------------------------------------------- #
#  params + wrapper
# --------------------------------------------------------------------------- #

def init_params(key, num_message_types=3, hidden_dim=32):
    ks = jax.random.split(key, 5)

    def linear(k, fan_in, fan_out):
        kw, kb = jax.random.split(k)
        bound = 1.0 / jnp.sqrt(jnp.asarray(fan_in, jnp.float32))
        w = jax.random.uniform(kw, (fan_out, fan_in), jnp.float32, -bound, bound)
        b = jax.random.uniform(kb, (fan_out,), jnp.float32, -bound, bound)
        return w, b

    type_emb = jax.random.normal(ks[0], (num_message_types, hidden_dim), jnp.float32)
    w1, b1 = linear(ks[1], 2 * hidden_dim, hidden_dim)    # var_to_check_update[0]
    w2, b2 = linear(ks[2], hidden_dim, hidden_dim)        # var_to_check_update[2]
    w_in, b_in = linear(ks[3], 1, hidden_dim)             # input_embedding
    w_out, b_out = linear(ks[4], hidden_dim, 1)           # output_projection
    alpha = jnp.asarray(0.8, jnp.float32)
    return dict(type_emb=type_emb, w1=w1, b1=b1, w2=w2, b2=b2,
                w_in=w_in, b_in=b_in, w_out=w_out, b_out=b_out, alpha=alpha)


def custom_check_message_gnn_forward(params, message_features, message_types,
                                     var_to_check_adjacency, check_index_tensor,
                                     batch_tile=None, use_bf16_mxu=True):
    """Forward of CustomCheckMessageGNNLayer (check_index_tensor path)."""
    B, M, H = message_features.shape
    T = params["type_emb"].shape[0]
    mxu_dtype = jnp.bfloat16 if use_bf16_mxu else jnp.float32
    mxu_bytes = 2 if use_bf16_mxu else 4

    # --- glue: pad / truncate message_types, gather type embeddings ---
    mt = jnp.asarray(message_types, jnp.int32)
    if mt.shape[0] < M:
        mt = jnp.concatenate([mt, jnp.zeros((M - mt.shape[0],), jnp.int32)])
    else:
        mt = mt[:M]
    mt = jnp.clip(mt, 0, T - 1)
    type_emb = params["type_emb"][mt].astype(jnp.float32)             # (M, H)

    # --- glue: resize adjacency like the torch module does ---
    adj = var_to_check_adjacency.astype(jnp.float32)
    if adj.shape != (M, M):
        ms = min(adj.shape[0], adj.shape[1], M)
        adj = jnp.zeros((M, M), jnp.float32).at[:ms, :ms].set(adj[:ms, :ms])

    R, K = check_index_tensor.shape
    assert R == M, "final residual add requires num_index_rows == num_messages"
    idx = check_index_tensor.astype(jnp.int32)
    mf = message_features.astype(jnp.float32)

    # --- pad M to a sublane multiple (replaces the old giant-block fallback) ---
    M_pad = ((M + 7) // 8) * 8
    if M_pad != M:
        adj = jnp.pad(adj, ((0, M_pad - M), (0, M_pad - M)))
        idx = jnp.pad(idx, ((0, M_pad - M), (0, 0)), constant_values=-1)
        type_emb = jnp.pad(type_emb, ((0, M_pad - M), (0, 0)))
        mf = jnp.pad(mf, ((0, 0), (0, M_pad - M), (0, 0)))

    # --- generation-aware batch tiling (VMEM budget from the HW query) ---
    vmem_cap = _vmem_capacity_bytes()
    q = _lane_quantum(H)
    if batch_tile is not None:
        TB = max(1, int(batch_tile))
    else:
        TB = _choose_batch_tile(B, M_pad, H, K, int(0.6 * vmem_cap), mxu_bytes)
    TB = min(TB, B)
    if TB < B and (TB * H) % 128 != 0:
        TB = min(B, ((TB + q - 1) // q) * q)        # keep lane-dense blocks
    B_pad = ((B + TB - 1) // TB) * TB
    grid = B_pad // TB
    if B_pad != B:
        mf = jnp.pad(mf, ((0, B_pad - B), (0, 0), (0, 0)))

    # batch packed along lanes: column b*H + h  <->  (batch b, feature h)
    msg_packed = jnp.transpose(mf, (1, 0, 2)).reshape(M_pad, B_pad * H)

    # --- weight layout for the kernel ---
    w1T = params["w1"].T.astype(mxu_dtype)                            # (2H, H)
    w2T = params["w2"].T.astype(mxu_dtype)                            # (H, H)
    b1 = params["b1"][None, :].astype(jnp.float32)                    # (1, H)
    b2 = params["b2"][None, :].astype(jnp.float32)                    # (1, H)
    wout_row = params["w_out"].astype(jnp.float32)                    # (1, H)  VPU
    win_row = params["w_in"].T.astype(jnp.float32)                    # (1, H)
    bin_row = params["b_in"][None, :].astype(jnp.float32)             # (1, H)
    scal = jnp.stack([params["alpha"].astype(jnp.float32),
                      params["b_out"][0].astype(jnp.float32)])        # SMEM scalars

    const = lambda shape: pl.BlockSpec(shape, lambda i: (0,) * len(shape))

    grid_spec = pltpu.PrefetchScalarGridSpec(
        num_scalar_prefetch=0,
        grid=(grid,),
        in_specs=[
            pl.BlockSpec((M_pad, TB * H), lambda i: (0, i)),          # packed messages
            const((M_pad, H)),                                        # type embeddings
            const((M_pad, M_pad)),                                    # adjacency
            const((2 * H, H)), const((1, H)),                         # Linear(2H->H)
            const((H, H)), const((1, H)),                             # Linear(H->H)
            const((1, H)),                                            # output proj row
            const((M_pad, K)),                                        # check index table
            const((1, H)), const((1, H)),                             # input embedding
            pl.BlockSpec(memory_space=pltpu.MemorySpace.SMEM),        # [alpha, b_out]
        ],
        out_specs=pl.BlockSpec((M_pad, TB * H), lambda i: (0, i)),
    )

    vmem_limit = int(min(0.9 * vmem_cap,
                         max(32 * 1024 * 1024,
                             2 * _vmem_estimate(TB, M_pad, H, K, mxu_bytes))))

    out_packed = pl.pallas_call(
        _gnn_message_kernel,
        out_shape=jax.ShapeDtypeStruct((M_pad, B_pad * H), jnp.float32),
        grid_spec=grid_spec,
        compiler_params=pltpu.CompilerParams(
            dimension_semantics=("parallel",),
            vmem_limit_bytes=vmem_limit),
    )(msg_packed, type_emb, adj.astype(mxu_dtype),
      w1T, b1, w2T, b2, wout_row, idx, win_row, bin_row, scal)

    out = out_packed.reshape(M_pad, B_pad, H).transpose(1, 0, 2)
    return out[:B, :M]


def reference_forward(params, msg, mtypes, adj, check_idx, mxu_dtype=jnp.float32):
    """Plain-JAX replica of the PyTorch forward (check_index_tensor path).

    mxu_dtype=bfloat16 mirrors the kernel's bf16-MXU-operand mode (f32 accum).
    """
    B, M, H = msg.shape
    T = params["type_emb"].shape[0]
    c = lambda t: t.astype(mxu_dtype)

    mt = jnp.asarray(mtypes, jnp.int32)
    if mt.shape[0] < M:
        mt = jnp.concatenate([mt, jnp.zeros((M - mt.shape[0],), jnp.int32)])
    else:
        mt = mt[:M]
    mt = jnp.clip(mt, 0, T - 1)

    combined = msg + params["type_emb"][mt][None]
    v2c = jnp.einsum('mn,bnh->bmh', c(adj), c(combined),
                     preferred_element_type=jnp.float32)
    x = jnp.concatenate([c(combined), c(v2c)], axis=-1)
    h1 = jax.nn.relu(jnp.einsum('bmi,oi->bmo', x, c(params["w1"]),
                                preferred_element_type=jnp.float32) + params["b1"])
    h2 = (jnp.einsum('bmi,oi->bmo', c(h1), c(params["w2"]),
                     preferred_element_type=jnp.float32) + params["b2"])
    llr = jnp.sum(h2 * params["w_out"][0][None, None, :], axis=-1) + params["b_out"][0]
    llr_g = c(llr).astype(jnp.float32)        # the kernel feeds the gather in mxu_dtype

    valid = check_idx != -1
    safe = jnp.where(valid, check_idx, M)
    llr_ext = jnp.concatenate([llr_g, jnp.zeros((B, 1), jnp.float32)], axis=1)
    selected = llr_ext[:, safe]                                   # (B, R, K)
    selected = jnp.where(valid[None], selected, 0.0)
    sign_prod = jnp.prod(jnp.sign(selected + 1e-10), axis=-1)
    absv = jnp.abs(selected)
    absv = jnp.where(absv == 0.0, 1e10, absv)
    min_abs = params["alpha"] * jnp.min(absv, axis=-1)
    check_llr = sign_prod * min_abs                               # (B, R)
    c2v = check_llr[..., None] * params["w_in"][:, 0][None, None, :] + params["b_in"]
    return h2 + c2v


if __name__ == "__main__":
    key = jax.random.PRNGKey(0)
    B, M, H, K_sel, T = 2, 8, 32, 4, 3
    kp, kf, kt, ka, kc = jax.random.split(key, 5)

    params = init_params(kp, num_message_types=T, hidden_dim=H)
    message_features = jax.random.normal(kf, (B, M, H), jnp.float32)
    message_types = jax.random.randint(kt, (M,), 0, T, jnp.int32)
    var_to_check_adjacency = (jax.random.uniform(ka, (M, M)) < 0.3).astype(jnp.float32)
    check_index_tensor = jax.random.randint(kc, (M, K_sel), 0, M, jnp.int32)
    # add some -1 padding entries like real LDPC check tables
    check_index_tensor = check_index_tensor.at[:, -1].set(
        jnp.where(jnp.arange(M) % 2 == 0, -1, check_index_tensor[:, -1]))

    # exact f32-MXU path: tight check against the f32 reference
    out_f32 = custom_check_message_gnn_forward(
        params, message_features, message_types,
        var_to_check_adjacency, check_index_tensor, use_bf16_mxu=False)
    out_f32 = jax.block_until_ready(out_f32)
    ref_f32 = reference_forward(params, message_features, message_types,
                                var_to_check_adjacency, check_index_tensor,
                                mxu_dtype=jnp.float32)
    assert out_f32.shape == (B, M, H)
    err_f32 = float(jnp.max(jnp.abs(out_f32 - ref_f32)))
    assert err_f32 < 1e-3, f"f32 path max error {err_f32}"

    # bf16-MXU-operand path (perf default): check against a bf16-operand reference
    out_bf16 = custom_check_message_gnn_forward(
        params, message_features, message_types,
        var_to_check_adjacency, check_index_tensor, use_bf16_mxu=True)
    out_bf16 = jax.block_until_ready(out_bf16)
    ref_bf16 = reference_forward(params, message_features, message_types,
                                 var_to_check_adjacency, check_index_tensor,
                                 mxu_dtype=jnp.bfloat16)
    err_bf16 = float(jnp.max(jnp.abs(out_bf16 - ref_bf16)))
    assert err_bf16 < 2e-2, f"bf16 path max error {err_bf16}"

    # TODO(synk): the `check_index_tensor is None` branch uses self.check_to_var_update,
    # which is never defined in __init__ (would raise in PyTorch), so it is not implemented.
    # TODO(synk): decode_messages() is a trivial projection and is not kernelized.
    print("KERNEL_OK")
</pallas_src>

<mosaic_0001>
module attributes {stable_mosaic.version = 11 : i64} {
  func.func @_gnn_message_kernel(%arg0: i32, %arg1: memref<8x64xf32, #tpu.memory_space<vmem>>, %arg2: memref<8x32xf32, #tpu.memory_space<vmem>>, %arg3: memref<8x8xf32, #tpu.memory_space<vmem>>, %arg4: memref<64x32xf32, #tpu.memory_space<vmem>>, %arg5: memref<1x32xf32, #tpu.memory_space<vmem>>, %arg6: memref<32x32xf32, #tpu.memory_space<vmem>>, %arg7: memref<1x32xf32, #tpu.memory_space<vmem>>, %arg8: memref<1x32xf32, #tpu.memory_space<vmem>>, %arg9: memref<8x4xi32, #tpu.memory_space<vmem>>, %arg10: memref<1x32xf32, #tpu.memory_space<vmem>>, %arg11: memref<1x32xf32, #tpu.memory_space<vmem>>, %arg12: memref<2xf32, #tpu.memory_space<smem>>, %arg13: memref<8x64xf32, #tpu.memory_space<vmem>>) attributes {dimension_semantics = [#tpu.dimension_semantics<parallel>], iteration_bounds = array<i64: 1>, scalar_prefetch = 0 : i64, scratch_operands = 0 : i64, tpu.core_type = #tpu.core_type<tc>, window_params = [{transform_indices = @transform_0, window_bounds = array<i64: 8, 64>}, {pipeline_mode = #tpu.pipeline_mode<synchronous>, transform_indices = @transform_1, window_bounds = array<i64: 8, 32>}, {pipeline_mode = #tpu.pipeline_mode<synchronous>, transform_indices = @transform_2, window_bounds = array<i64: 8, 8>}, {pipeline_mode = #tpu.pipeline_mode<synchronous>, transform_indices = @transform_3, window_bounds = array<i64: 64, 32>}, {pipeline_mode = #tpu.pipeline_mode<synchronous>, transform_indices = @transform_4, window_bounds = array<i64: 1, 32>}, {pipeline_mode = #tpu.pipeline_mode<synchronous>, transform_indices = @transform_5, window_bounds = array<i64: 32, 32>}, {pipeline_mode = #tpu.pipeline_mode<synchronous>, transform_indices = @transform_6, window_bounds = array<i64: 1, 32>}, {pipeline_mode = #tpu.pipeline_mode<synchronous>, transform_indices = @transform_7, window_bounds = array<i64: 1, 32>}, {pipeline_mode = #tpu.pipeline_mode<synchronous>, transform_indices = @transform_8, window_bounds = array<i64: 8, 4>}, {pipeline_mode = #tpu.pipeline_mode<synchronous>, transform_indices = @transform_9, window_bounds = array<i64: 1, 32>}, {pipeline_mode = #tpu.pipeline_mode<synchronous>, transform_indices = @transform_10, window_bounds = array<i64: 1, 32>}, {transform_indices = @transform_11, window_bounds = array<i64: 2>}, {transform_indices = @transform_12, window_bounds = array<i64: 8, 64>}]} {
    %c0 = arith.constant 0 : index
    %0 = memref.load %arg12[%c0] : memref<2xf32, #tpu.memory_space<smem>>
    %c1 = arith.constant 1 : index
    %1 = memref.load %arg12[%c1] : memref<2xf32, #tpu.memory_space<smem>>
    %c0_0 = arith.constant 0 : index
    %c0_1 = arith.constant 0 : index
    %2 = vector.load %arg2[%c0_0, %c0_1] : memref<8x32xf32, #tpu.memory_space<vmem>>, vector<8x32xf32>
    %3 = tpu.concatenate %2, %2 in 1 : vector<8x32xf32>, vector<8x32xf32> -> vector<8x64xf32>
    %c0_2 = arith.constant 0 : index
    %c0_3 = arith.constant 0 : index
    %4 = vector.load %arg1[%c0_2, %c0_3] : memref<8x64xf32, #tpu.memory_space<vmem>>, vector<8x64xf32>
    %5 = arith.addf %4, %3 : vector<8x64xf32>
    %c0_4 = arith.constant 0 : index
    %c0_5 = arith.constant 0 : index
    %6 = vector.load %arg3[%c0_4, %c0_5] : memref<8x8xf32, #tpu.memory_space<vmem>>, vector<8x8xf32>
    %cst = arith.constant dense<0.000000e+00> : vector<8x64xf32>
    %7 = tpu.matmul %6, %5, %cst {dimension_numbers = #tpu.dot_dimension_numbers<[1], [0], [0], [1], [0, 0, 1, 1], [], []>} : vector<8x8xf32>, vector<8x64xf32>, vector<8x64xf32> -> vector<8x64xf32>
    %8 = vector.extract_strided_slice %5 {offsets = [0, 0], sizes = [8, 32], strides = [1, 1]} : vector<8x64xf32> to vector<8x32xf32>
    %9 = vector.extract_strided_slice %7 {offsets = [0, 0], sizes = [8, 32], strides = [1, 1]} : vector<8x64xf32> to vector<8x32xf32>
    %10 = tpu.concatenate %8, %9 in 1 : vector<8x32xf32>, vector<8x32xf32> -> vector<8x64xf32>
    %c0_6 = arith.constant 0 : index
    %c0_7 = arith.constant 0 : index
    %11 = vector.load %arg4[%c0_6, %c0_7] : memref<64x32xf32, #tpu.memory_space<vmem>>, vector<64x32xf32>
    %cst_8 = arith.constant dense<0.000000e+00> : vector<8x32xf32>
    %12 = tpu.matmul %10, %11, %cst_8 {dimension_numbers = #tpu.dot_dimension_numbers<[1], [0], [0], [1], [0, 0, 1, 1], [], []>} : vector<8x64xf32>, vector<64x32xf32>, vector<8x32xf32> -> vector<8x32xf32>
    %c0_9 = arith.constant 0 : index
    %c0_10 = arith.constant 0 : index
    %13 = vector.load %arg5[%c0_9, %c0_10] : memref<1x32xf32, #tpu.memory_space<vmem>>, vector<1x32xf32>
    %14 = vector.broadcast %13 : vector<1x32xf32> to vector<8x32xf32>
    %15 = arith.addf %12, %14 : vector<8x32xf32>
    %cst_11 = arith.constant 0.000000e+00 : f32
    %16 = vector.broadcast %cst_11 : f32 to vector<8x32xf32>
    %17 = arith.maximumf %15, %16 : vector<8x32xf32>
    %c0_12 = arith.constant 0 : index
    %c0_13 = arith.constant 0 : index
    %18 = vector.load %arg6[%c0_12, %c0_13] : memref<32x32xf32, #tpu.memory_space<vmem>>, vector<32x32xf32>
    %cst_14 = arith.constant dense<0.000000e+00> : vector<8x32xf32>
    %19 = tpu.matmul %17, %18, %cst_14 {dimension_numbers = #tpu.dot_dimension_numbers<[1], [0], [0], [1], [0, 0, 1, 1], [], []>} : vector<8x32xf32>, vector<32x32xf32>, vector<8x32xf32> -> vector<8x32xf32>
    %c0_15 = arith.constant 0 : index
    %c0_16 = arith.constant 0 : index
    %20 = vector.load %arg7[%c0_15, %c0_16] : memref<1x32xf32, #tpu.memory_space<vmem>>, vector<1x32xf32>
    %21 = vector.broadcast %20 : vector<1x32xf32> to vector<8x32xf32>
    %22 = arith.addf %19, %21 : vector<8x32xf32>
    %c0_17 = arith.constant 0 : index
    %c0_18 = arith.constant 0 : index
    %23 = vector.load %arg8[%c0_17, %c0_18] : memref<1x32xf32, #tpu.memory_space<vmem>>, vector<1x32xf32>
    %24 = vector.broadcast %23 : vector<1x32xf32> to vector<8x32xf32>
    %25 = arith.mulf %22, %24 : vector<8x32xf32>
    %cst_19 = arith.constant dense<0.000000e+00> : vector<8xf32>
    %26 = vector.multi_reduction <add>, %25, %cst_19 [1] : vector<8x32xf32> to vector<8xf32>
    %27 = vector.shape_cast %26 : vector<8xf32> to vector<8x1xf32>
    %28 = vector.broadcast %1 : f32 to vector<8x1xf32>
    %29 = arith.addf %27, %28 : vector<8x1xf32>
    %30 = vector.extract_strided_slice %5 {offsets = [0, 32], sizes = [8, 32], strides = [1, 1]} : vector<8x64xf32> to vector<8x32xf32>
    %31 = vector.extract_strided_slice %7 {offsets = [0, 32], sizes = [8, 32], strides = [1, 1]} : vector<8x64xf32> to vector<8x32xf32>
    %32 = tpu.concatenate %30, %31 in 1 : vector<8x32xf32>, vector<8x32xf32> -> vector<8x64xf32>
    %c0_20 = arith.constant 0 : index
    %c0_21 = arith.constant 0 : index
    %33 = vector.load %arg4[%c0_20, %c0_21] : memref<64x32xf32, #tpu.memory_space<vmem>>, vector<64x32xf32>
    %cst_22 = arith.constant dense<0.000000e+00> : vector<8x32xf32>
    %34 = tpu.matmul %32, %33, %cst_22 {dimension_numbers = #tpu.dot_dimension_numbers<[1], [0], [0], [1], [0, 0, 1, 1], [], []>} : vector<8x64xf32>, vector<64x32xf32>, vector<8x32xf32> -> vector<8x32xf32>
    %c0_23 = arith.constant 0 : index
    %c0_24 = arith.constant 0 : index
    %35 = vector.load %arg5[%c0_23, %c0_24] : memref<1x32xf32, #tpu.memory_space<vmem>>, vector<1x32xf32>
    %36 = vector.broadcast %35 : vector<1x32xf32> to vector<8x32xf32>
    %37 = arith.addf %34, %36 : vector<8x32xf32>
    %cst_25 = arith.constant 0.000000e+00 : f32
    %38 = vector.broadcast %cst_25 : f32 to vector<8x32xf32>
    %39 = arith.maximumf %37, %38 : vector<8x32xf32>
    %c0_26 = arith.constant 0 : index
    %c0_27 = arith.constant 0 : index
    %40 = vector.load %arg6[%c0_26, %c0_27] : memref<32x32xf32, #tpu.memory_space<vmem>>, vector<32x32xf32>
    %cst_28 = arith.constant dense<0.000000e+00> : vector<8x32xf32>
    %41 = tpu.matmul %39, %40, %cst_28 {dimension_numbers = #tpu.dot_dimension_numbers<[1], [0], [0], [1], [0, 0, 1, 1], [], []>} : vector<8x32xf32>, vector<32x32xf32>, vector<8x32xf32> -> vector<8x32xf32>
    %c0_29 = arith.constant 0 : index
    %c0_30 = arith.constant 0 : index
    %42 = vector.load %arg7[%c0_29, %c0_30] : memref<1x32xf32, #tpu.memory_space<vmem>>, vector<1x32xf32>
    %43 = vector.broadcast %42 : vector<1x32xf32> to vector<8x32xf32>
    %44 = arith.addf %41, %43 : vector<8x32xf32>
    %c0_31 = arith.constant 0 : index
    %c0_32 = arith.constant 0 : index
    %45 = vector.load %arg8[%c0_31, %c0_32] : memref<1x32xf32, #tpu.memory_space<vmem>>, vector<1x32xf32>
    %46 = vector.broadcast %45 : vector<1x32xf32> to vector<8x32xf32>
    %47 = arith.mulf %44, %46 : vector<8x32xf32>
    %cst_33 = arith.constant dense<0.000000e+00> : vector<8xf32>
    %48 = vector.multi_reduction <add>, %47, %cst_33 [1] : vector<8x32xf32> to vector<8xf32>
    %49 = vector.shape_cast %48 : vector<8xf32> to vector<8x1xf32>
    %50 = vector.broadcast %1 : f32 to vector<8x1xf32>
    %51 = arith.addf %49, %50 : vector<8x1xf32>
    %52 = tpu.concatenate %29, %51 in 1 : vector<8x1xf32>, vector<8x1xf32> -> vector<8x2xf32>
    %53 = tpu.iota {dimensions = array<i32: 1>} : vector<8x8xi32>
    %c0_34 = arith.constant 0 : index
    %c0_35 = arith.constant 0 : index
    %54 = vector.load %arg9[%c0_34, %c0_35] : memref<8x4xi32, #tpu.memory_space<vmem>>, vector<8x1xi32>
    %55 = vector.broadcast %54 : vector<8x1xi32> to vector<8x8xi32>
    %56 = arith.cmpi eq, %53, %55 : vector<8x8xi32>
    %57 = arith.extui %56 : vector<8x8xi1> to vector<8x8xi32>
    %58 = arith.sitofp %57 : vector<8x8xi32> to vector<8x8xf32>
    %cst_36 = arith.constant dense<0.000000e+00> : vector<8x2xf32>
    %59 = tpu.matmul %58, %52, %cst_36 {dimension_numbers = #tpu.dot_dimension_numbers<[1], [0], [0], [1], [0, 0, 1, 1], [], []>} : vector<8x8xf32>, vector<8x2xf32>, vector<8x2xf32> -> vector<8x2xf32>
    %60 = math.absf %59 : vector<8x2xf32>
    %cst_37 = arith.constant 0.000000e+00 : f32
    %61 = vector.broadcast %cst_37 : f32 to vector<8x2xf32>
    %62 = arith.cmpf oeq, %60, %61 : vector<8x2xf32>
    %cst_38 = arith.constant 1.000000e+10 : f32
    %63 = vector.broadcast %cst_38 : f32 to vector<8x2xf32>
    %64 = arith.select %62, %63, %60 : vector<8x2xi1>, vector<8x2xf32>
    %cst_39 = arith.constant 1.000000e-10 : f32
    %65 = vector.broadcast %cst_39 : f32 to vector<8x2xf32>
    %66 = arith.addf %59, %65 : vector<8x2xf32>
    %cst_40 = arith.constant 0.000000e+00 : f32
    %67 = vector.broadcast %cst_40 : f32 to vector<8x2xf32>
    %68 = arith.cmpf olt, %66, %67 : vector<8x2xf32>
    %cst_41 = arith.constant -1.000000e+00 : f32
    %cst_42 = arith.constant 1.000000e+00 : f32
    %69 = vector.broadcast %cst_41 : f32 to vector<8x2xf32>
    %70 = vector.broadcast %cst_42 : f32 to vector<8x2xf32>
    %71 = arith.select %68, %69, %70 : vector<8x2xi1>, vector<8x2xf32>
    %c0_43 = arith.constant 0 : index
    %c1_44 = arith.constant 1 : index
    %72 = vector.load %arg9[%c0_43, %c1_44] : memref<8x4xi32, #tpu.memory_space<vmem>>, vector<8x1xi32>
    %73 = vector.broadcast %72 : vector<8x1xi32> to vector<8x8xi32>
    %74 = arith.cmpi eq, %53, %73 : vector<8x8xi32>
    %75 = arith.extui %74 : vector<8x8xi1> to vector<8x8xi32>
    %76 = arith.sitofp %75 : vector<8x8xi32> to vector<8x8xf32>
    %cst_45 = arith.constant dense<0.000000e+00> : vector<8x2xf32>
    %77 = tpu.matmul %76, %52, %cst_45 {dimension_numbers = #tpu.dot_dimension_numbers<[1], [0], [0], [1], [0, 0, 1, 1], [], []>} : vector<8x8xf32>, vector<8x2xf32>, vector<8x2xf32> -> vector<8x2xf32>
    %78 = math.absf %77 : vector<8x2xf32>
    %cst_46 = arith.constant 0.000000e+00 : f32
    %79 = vector.broadcast %cst_46 : f32 to vector<8x2xf32>
    %80 = arith.cmpf oeq, %78, %79 : vector<8x2xf32>
    %cst_47 = arith.constant 1.000000e+10 : f32
    %81 = vector.broadcast %cst_47 : f32 to vector<8x2xf32>
    %82 = arith.select %80, %81, %78 : vector<8x2xi1>, vector<8x2xf32>
    %cst_48 = arith.constant 1.000000e-10 : f32
    %83 = vector.broadcast %cst_48 : f32 to vector<8x2xf32>
    %84 = arith.addf %77, %83 : vector<8x2xf32>
    %cst_49 = arith.constant 0.000000e+00 : f32
    %85 = vector.broadcast %cst_49 : f32 to vector<8x2xf32>
    %86 = arith.cmpf olt, %84, %85 : vector<8x2xf32>
    %cst_50 = arith.constant -1.000000e+00 : f32
    %cst_51 = arith.constant 1.000000e+00 : f32
    %87 = vector.broadcast %cst_50 : f32 to vector<8x2xf32>
    %88 = vector.broadcast %cst_51 : f32 to vector<8x2xf32>
    %89 = arith.select %86, %87, %88 : vector<8x2xi1>, vector<8x2xf32>
    %90 = arith.minimumf %64, %82 : vector<8x2xf32>
    %91 = arith.mulf %71, %89 : vector<8x2xf32>
    %c0_52 = arith.constant 0 : index
    %c2 = arith.constant 2 : index
    %92 = vector.load %arg9[%c0_52, %c2] : memref<8x4xi32, #tpu.memory_space<vmem>>, vector<8x1xi32>
    %93 = vector.broadcast %92 : vector<8x1xi32> to vector<8x8xi32>
    %94 = arith.cmpi eq, %53, %93 : vector<8x8xi32>
    %95 = arith.extui %94 : vector<8x8xi1> to vector<8x8xi32>
    %96 = arith.sitofp %95 : vector<8x8xi32> to vector<8x8xf32>
    %cst_53 = arith.constant dense<0.000000e+00> : vector<8x2xf32>
    %97 = tpu.matmul %96, %52, %cst_53 {dimension_numbers = #tpu.dot_dimension_numbers<[1], [0], [0], [1], [0, 0, 1, 1], [], []>} : vector<8x8xf32>, vector<8x2xf32>, vector<8x2xf32> -> vector<8x2xf32>
    %98 = math.absf %97 : vector<8x2xf32>
    %cst_54 = arith.constant 0.000000e+00 : f32
    %99 = vector.broadcast %cst_54 : f32 to vector<8x2xf32>
    %100 = arith.cmpf oeq, %98, %99 : vector<8x2xf32>
    %cst_55 = arith.constant 1.000000e+10 : f32
    %101 = vector.broadcast %cst_55 : f32 to vector<8x2xf32>
    %102 = arith.select %100, %101, %98 : vector<8x2xi1>, vector<8x2xf32>
    %cst_56 = arith.constant 1.000000e-10 : f32
    %103 = vector.broadcast %cst_56 : f32 to vector<8x2xf32>
    %104 = arith.addf %97, %103 : vector<8x2xf32>
    %cst_57 = arith.constant 0.000000e+00 : f32
    %105 = vector.broadcast %cst_57 : f32 to vector<8x2xf32>
    %106 = arith.cmpf olt, %104, %105 : vector<8x2xf32>
    %cst_58 = arith.constant -1.000000e+00 : f32
    %cst_59 = arith.constant 1.000000e+00 : f32
    %107 = vector.broadcast %cst_58 : f32 to vector<8x2xf32>
    %108 = vector.broadcast %cst_59 : f32 to vector<8x2xf32>
    %109 = arith.select %106, %107, %108 : vector<8x2xi1>, vector<8x2xf32>
    %110 = arith.minimumf %90, %102 : vector<8x2xf32>
    %111 = arith.mulf %91, %109 : vector<8x2xf32>
    %c0_60 = arith.constant 0 : index
    %c3 = arith.constant 3 : index
    %112 = vector.load %arg9[%c0_60, %c3] : memref<8x4xi32, #tpu.memory_space<vmem>>, vector<8x1xi32>
    %113 = vector.broadcast %112 : vector<8x1xi32> to vector<8x8xi32>
    %114 = arith.cmpi eq, %53, %113 : vector<8x8xi32>
    %115 = arith.extui %114 : vector<8x8xi1> to vector<8x8xi32>
    %116 = arith.sitofp %115 : vector<8x8xi32> to vector<8x8xf32>
    %cst_61 = arith.constant dense<0.000000e+00> : vector<8x2xf32>
    %117 = tpu.matmul %116, %52, %cst_61 {dimension_numbers = #tpu.dot_dimension_numbers<[1], [0], [0], [1], [0, 0, 1, 1], [], []>} : vector<8x8xf32>, vector<8x2xf32>, vector<8x2xf32> -> vector<8x2xf32>
    %118 = math.absf %117 : vector<8x2xf32>
    %cst_62 = arith.constant 0.000000e+00 : f32
    %119 = vector.broadcast %cst_62 : f32 to vector<8x2xf32>
    %120 = arith.cmpf oeq, %118, %119 : vector<8x2xf32>
    %cst_63 = arith.constant 1.000000e+10 : f32
    %121 = vector.broadcast %cst_63 : f32 to vector<8x2xf32>
    %122 = arith.select %120, %121, %118 : vector<8x2xi1>, vector<8x2xf32>
    %cst_64 = arith.constant 1.000000e-10 : f32
    %123 = vector.broadcast %cst_64 : f32 to vector<8x2xf32>
    %124 = arith.addf %117, %123 : vector<8x2xf32>
    %cst_65 = arith.constant 0.000000e+00 : f32
    %125 = vector.broadcast %cst_65 : f32 to vector<8x2xf32>
    %126 = arith.cmpf olt, %124, %125 : vector<8x2xf32>
    %cst_66 = arith.constant -1.000000e+00 : f32
    %cst_67 = arith.constant 1.000000e+00 : f32
    %127 = vector.broadcast %cst_66 : f32 to vector<8x2xf32>
    %128 = vector.broadcast %cst_67 : f32 to vector<8x2xf32>
    %129 = arith.select %126, %127, %128 : vector<8x2xi1>, vector<8x2xf32>
    %130 = arith.minimumf %110, %122 : vector<8x2xf32>
    %131 = arith.mulf %111, %129 : vector<8x2xf32>
    %132 = vector.broadcast %0 : f32 to vector<8x2xf32>
    %133 = arith.mulf %132, %130 : vector<8x2xf32>
    %134 = arith.mulf %133, %131 : vector<8x2xf32>
    %135 = vector.extract_strided_slice %134 {offsets = [0, 0], sizes = [8, 1], strides = [1, 1]} : vector<8x2xf32> to vector<8x1xf32>
    %c0_68 = arith.constant 0 : index
    %c0_69 = arith.constant 0 : index
    %136 = vector.load %arg10[%c0_68, %c0_69] : memref<1x32xf32, #tpu.memory_space<vmem>>, vector<1x32xf32>
    %137 = vector.broadcast %135 : vector<8x1xf32> to vector<8x32xf32>
    %138 = vector.broadcast %136 : vector<1x32xf32> to vector<8x32xf32>
    %139 = arith.mulf %137, %138 : vector<8x32xf32>
    %140 = arith.addf %22, %139 : vector<8x32xf32>
    %c0_70 = arith.constant 0 : index
    %c0_71 = arith.constant 0 : index
    %141 = vector.load %arg11[%c0_70, %c0_71] : memref<1x32xf32, #tpu.memory_space<vmem>>, vector<1x32xf32>
    %142 = vector.broadcast %141 : vector<1x32xf32> to vector<8x32xf32>
    %143 = arith.addf %140, %142 : vector<8x32xf32>
    %144 = vector.extract_strided_slice %134 {offsets = [0, 1], sizes = [8, 1], strides = [1, 1]} : vector<8x2xf32> to vector<8x1xf32>
    %c0_72 = arith.constant 0 : index
    %c0_73 = arith.constant 0 : index
    %145 = vector.load %arg10[%c0_72, %c0_73] : memref<1x32xf32, #tpu.memory_space<vmem>>, vector<1x32xf32>
    %146 = vector.broadcast %144 : vector<8x1xf32> to vector<8x32xf32>
    %147 = vector.broadcast %145 : vector<1x32xf32> to vector<8x32xf32>
    %148 = arith.mulf %146, %147 : vector<8x32xf32>
    %149 = arith.addf %44, %148 : vector<8x32xf32>
    %c0_74 = arith.constant 0 : index
    %c0_75 = arith.constant 0 : index
    %150 = vector.load %arg11[%c0_74, %c0_75] : memref<1x32xf32, #tpu.memory_space<vmem>>, vector<1x32xf32>
    %151 = vector.broadcast %150 : vector<1x32xf32> to vector<8x32xf32>
    %152 = arith.addf %149, %151 : vector<8x32xf32>
    %153 = tpu.concatenate %143, %152 in 1 : vector<8x32xf32>, vector<8x32xf32> -> vector<8x64xf32>
    %c0_76 = arith.constant 0 : index
    %c0_77 = arith.constant 0 : index
    %154 = vector.load %arg13[%c0_76, %c0_77] : memref<8x64xf32, #tpu.memory_space<vmem>>, vector<8x64xf32>
    tpu.vector_store %arg13[%c0_76, %c0_77], %153 {strides = array<i32>} : memref<8x64xf32, #tpu.memory_space<vmem>>, vector<8x64xf32>,
    return
  }
  func.func @transform_0(%arg0: i32) -> (i32, i32) {
    %c0_i32 = arith.constant 0 : i32
    %c0_i32_0 = arith.constant 0 : i32
    return %c0_i32, %arg0 : i32, i32
  }
  func.func @transform_1(%arg0: i32) -> (i32, i32) {
    %c0_i32 = arith.constant 0 : i32
    %c0_i32_0 = arith.constant 0 : i32
    %c0_i32_1 = arith.constant 0 : i32
    return %c0_i32, %c0_i32_0 : i32, i32
  }
  func.func @transform_2(%arg0: i32) -> (i32, i32) {
    %c0_i32 = arith.constant 0 : i32
    %c0_i32_0 = arith.constant 0 : i32
    %c0_i32_1 = arith.constant 0 : i32
    return %c0_i32, %c0_i32_0 : i32, i32
  }
  func.func @transform_3(%arg0: i32) -> (i32, i32) {
    %c0_i32 = arith.constant 0 : i32
    %c0_i32_0 = arith.constant 0 : i32
    %c0_i32_1 = arith.constant 0 : i32
    return %c0_i32, %c0_i32_0 : i32, i32
  }
  func.func @transform_4(%arg0: i32) -> (i32, i32) {
    %c0_i32 = arith.constant 0 : i32
    %c0_i32_0 = arith.constant 0 : i32
    %c0_i32_1 = arith.constant 0 : i32
    return %c0_i32, %c0_i32_0 : i32, i32
  }
  func.func @transform_5(%arg0: i32) -> (i32, i32) {
    %c0_i32 = arith.constant 0 : i32
    %c0_i32_0 = arith.constant 0 : i32
    %c0_i32_1 = arith.constant 0 : i32
    return %c0_i32, %c0_i32_0 : i32, i32
  }
  func.func @transform_6(%arg0: i32) -> (i32, i32) {
    %c0_i32 = arith.constant 0 : i32
    %c0_i32_0 = arith.constant 0 : i32
    %c0_i32_1 = arith.constant 0 : i32
    return %c0_i32, %c0_i32_0 : i32, i32
  }
  func.func @transform_7(%arg0: i32) -> (i32, i32) {
    %c0_i32 = arith.constant 0 : i32
    %c0_i32_0 = arith.constant 0 : i32
    %c0_i32_1 = arith.constant 0 : i32
    return %c0_i32, %c0_i32_0 : i32, i32
  }
  func.func @transform_8(%arg0: i32) -> (i32, i32) {
    %c0_i32 = arith.constant 0 : i32
    %c0_i32_0 = arith.constant 0 : i32
    %c0_i32_1 = arith.constant 0 : i32
    return %c0_i32, %c0_i32_0 : i32, i32
  }
  func.func @transform_9(%arg0: i32) -> (i32, i32) {
    %c0_i32 = arith.constant 0 : i32
    %c0_i32_0 = arith.constant 0 : i32
    %c0_i32_1 = arith.constant 0 : i32
    return %c0_i32, %c0_i32_0 : i32, i32
  }
  func.func @transform_10(%arg0: i32) -> (i32, i32) {
    %c0_i32 = arith.constant 0 : i32
    %c0_i32_0 = arith.constant 0 : i32
    %c0_i32_1 = arith.constant 0 : i32
    return %c0_i32, %c0_i32_0 : i32, i32
  }
  func.func @transform_11(%arg0: i32) -> i32 {
    %c0_i32 = arith.constant 0 : i32
    %c0_i32_0 = arith.constant 0 : i32
    return %c0_i32 : i32
  }
  func.func @transform_12(%arg0: i32) -> (i32, i32) {
    %c0_i32 = arith.constant 0 : i32
    %c0_i32_0 = arith.constant 0 : i32
    return %c0_i32, %arg0 : i32, i32
  }
}

</mosaic_0001>

<llo_original>
// kernel: tpu_custom_call.1
$region0: #{tpu_custom_call.1}
  #allocation0 [shape = 'u32[]', space=smem, size = 0x4, offset = 0x4, fixed_abs, tag = 'smem constant byte address 0x4 - core index']
  #allocation1 [shape = 'u32[144,128]{1,0:T(1,128)}', space=vmem, size = 0x12000, scoped, tag = 'internal scratch']
  %s0 = inlined_call_operand.vmem [shape: f32[8,64], index: 0, kind: input, shape index: {}]
  %s1 = inlined_call_operand.vmem [shape: f32[8,32], index: 1, kind: input, shape index: {}]
  %s2 = inlined_call_operand.vmem [shape: f32[8,8], index: 2, kind: input, shape index: {}]
  %s3 = inlined_call_operand.vmem [shape: f32[64,32], index: 3, kind: input, shape index: {}]
  %s4 = inlined_call_operand.vmem [shape: f32[1,32], index: 4, kind: input, shape index: {}]
  %s5 = inlined_call_operand.vmem [shape: f32[32,32], index: 5, kind: input, shape index: {}]
  %s6 = inlined_call_operand.vmem [shape: f32[1,32], index: 6, kind: input, shape index: {}]
  %s7 = inlined_call_operand.vmem [shape: f32[1,32], index: 7, kind: input, shape index: {}]
  %s8 = inlined_call_operand.vmem [shape: s32[8,4], index: 8, kind: input, shape index: {}]
  %s9 = inlined_call_operand.vmem [shape: f32[1,32], index: 9, kind: input, shape index: {}]
  %s10 = inlined_call_operand.vmem [shape: f32[1,32], index: 10, kind: input, shape index: {}]
  %s11 = inlined_call_operand.vmem [shape: f32[2], index: 11, kind: input, shape index: {}]
  %s12 = inlined_call_operand.hbm [shape: f32[8,64], index: 12, kind: output, shape index: {}]
  %s13 = sld [smem:[#allocation0]]
  $region62: #{tpu_custom_call.1} parent=0
    _
  %s15 = ssub.s32 1, %s13
  %s16 = scalar_select 0, %s15, %s13
  $region1: #{tpu_custom_call.1} parent=0
    #allocation2 [shape = 'u8[512]{0}', space=smem, size = 0x200, scoped, tag = 'input window, operand 11, single buffered']
    #allocation3 [shape = 's32[1]{0}', space=sflag, size = 0x4, scoped, tag = 'scoped memory for tpu_custom_call.1']
    #allocation4 [shape = 's32[1]{0}', space=sflag, size = 0x4, scoped, tag = 'scoped memory for tpu_custom_call.1']
    #allocation5 [shape = 'u8[4096]{0}', space=vmem, size = 0x1000, scoped, tag = 'output window, operand 0, single buffered']
    %17 = vsyncpa [#allocation4], 0
    %18 = vsyncpa [#allocation3], 0
    // Predicated region
    $region2: #{tpu_custom_call.1} parent=1 // pred_check
      _
    $region3: #{tpu_custom_call.1} parent=1 // pred_check_branch
      %20 = sbr.rel (0) target = $region5
    $region4: #{tpu_custom_call.1} parent=1 // pred_region
      _
    $region5: #{tpu_custom_call.1} parent=1 // pred_fallthru
      _
    // Predicated region
    $region6: #{tpu_custom_call.1} parent=1 // pred_check
      _
    $region7: #{tpu_custom_call.1} parent=1 // pred_check_branch
      %22 = sbr.rel (0) target = $region9
    $region8: #{tpu_custom_call.1} parent=1 // pred_region
      _
    $region9: #{tpu_custom_call.1} parent=1 // pred_fallthru
      _
    // Predicated region
    $region10: #{tpu_custom_call.1} parent=1 // pred_check
      _
    $region11: #{tpu_custom_call.1} parent=1 // pred_check_branch
      %24 = sbr.rel (0) target = $region13
    $region12: #{tpu_custom_call.1} parent=1 // pred_region
      _
    $region13: #{tpu_custom_call.1} parent=1 // pred_fallthru
      _
    // Predicated region
    $region14: #{tpu_custom_call.1} parent=1 // pred_check
      _
    $region15: #{tpu_custom_call.1} parent=1 // pred_check_branch
      %26 = sbr.rel (0) target = $region17
    $region16: #{tpu_custom_call.1} parent=1 // pred_region
      _
    $region17: #{tpu_custom_call.1} parent=1 // pred_fallthru
      _
    // Predicated region
    $region18: #{tpu_custom_call.1} parent=1 // pred_check
      _
    $region19: #{tpu_custom_call.1} parent=1 // pred_check_branch
      %28 = sbr.rel (0) target = $region21
    $region20: #{tpu_custom_call.1} parent=1 // pred_region
      _
    $region21: #{tpu_custom_call.1} parent=1 // pred_fallthru
      _
    // Predicated region
    $region22: #{tpu_custom_call.1} parent=1 // pred_check
      _
    $region23: #{tpu_custom_call.1} parent=1 // pred_check_branch
      %30 = sbr.rel (0) target = $region25
    $region24: #{tpu_custom_call.1} parent=1 // pred_region
      _
    $region25: #{tpu_custom_call.1} parent=1 // pred_fallthru
      _
    // Predicated region
    $region26: #{tpu_custom_call.1} parent=1 // pred_check
      _
    $region27: #{tpu_custom_call.1} parent=1 // pred_check_branch
      %32 = sbr.rel (0) target = $region29
    $region28: #{tpu_custom_call.1} parent=1 // pred_region
      _
    $region29: #{tpu_custom_call.1} parent=1 // pred_fallthru
      _
    // Predicated region
    $region30: #{tpu_custom_call.1} parent=1 // pred_check
      _
    $region31: #{tpu_custom_call.1} parent=1 // pred_check_branch
      %34 = sbr.rel (0) target = $region33
    $region32: #{tpu_custom_call.1} parent=1 // pred_region
      _
    $region33: #{tpu_custom_call.1} parent=1 // pred_fallthru
      _
    // Predicated region
    $region34: #{tpu_custom_call.1} parent=1 // pred_check
      _
    $region35: #{tpu_custom_call.1} parent=1 // pred_check_branch
      %36 = sbr.rel (0) target = $region37
    $region36: #{tpu_custom_call.1} parent=1 // pred_region
      _
    $region37: #{tpu_custom_call.1} parent=1 // pred_fallthru
      _
    // Predicated region
    $region38: #{tpu_custom_call.1} parent=1 // pred_check
      _
    $region39: #{tpu_custom_call.1} parent=1 // pred_check_branch
      %38 = sbr.rel (0) target = $region41
    $region40: #{tpu_custom_call.1} parent=1 // pred_region
      _
    $region41: #{tpu_custom_call.1} parent=1 // pred_fallthru
      _
    // Predicated region
    $region42: #{tpu_custom_call.1} parent=1 // pred_check
      _
    $region43: #{tpu_custom_call.1} parent=1 // pred_check_branch
      %40 = sbr.rel (0) target = $region45
    $region44: #{tpu_custom_call.1} parent=1 // pred_region
      _
    $region45: #{tpu_custom_call.1} parent=1 // pred_fallthru
      _
    // Predicated region
    $region46: #{tpu_custom_call.1} parent=1 // pred_check
      _
    $region47: #{tpu_custom_call.1} parent=1 // pred_check_branch
      %42 = sbr.rel (0) target = $region49
    $region48: #{tpu_custom_call.1} parent=1 // pred_region
      %s44 = ssub.s32 16, 16
      %45 = vsyncadd [#allocation4], %s44
      %s47 = sshll.u32 %s11, 4
      %s48 = int_to_ptr.vmem [resolvable:$true] %s47
      %50 = dma.vmem_to_smem %s48, 16, [#allocation2], [#allocation4]
    $region49: #{tpu_custom_call.1} parent=1 // pred_fallthru
      _
    // Predicated region
    $region50: #{tpu_custom_call.1} parent=1 // pred_check
      _
    $region51: #{tpu_custom_call.1} parent=1 // pred_check_branch
      %52 = sbr.rel (0) target = $region53
    $region52: #{tpu_custom_call.1} parent=1 // pred_region
      %53 = dma.done [#allocation4], 16
    $region53: #{tpu_custom_call.1} parent=1 // pred_fallthru
      _
    %54 = sfence
    %s55 = sld [smem:[#allocation2]]
    %s56 = sld [smem:[#allocation2 + $0x1]]
    %v57 = vld [vmem:[%s1] sm:$0xff]
    %59 = vrot.lane.b32.xlu0 %v57, 32
    %v60 = vpop.permute.xlu0 %59
    %vm62 = vcmask 261120
    %v63 = vsel %vm62, %v57, %v60
    %v64 = vld [vmem:[%s0] sm:$0xff]
    %v65 = vadd.f32 %v64, %v63
    %v66 = vld [vmem:[%s2] sm:$0xff]
    %vm67 = vcmask 64512
    %v69 = vsel %vm67, %v66, 0
    %71 = vmatprep.subr.mxu0 0.0
    %72 = vmatpush1.msra.mxu0 %v65
    %73 = vmatprep.subr.mxu0 0.0
    %74 = vmatpush1.msra.mxu0 0.0
    %75 = vmatprep.subr.mxu0 0.0
    %76 = vmatpush1.msra.mxu0 0.0
    %77 = vmatprep.subr.mxu0 0.0
    %78 = vmatpush1.msra.mxu0 0.0
    %79 = vmatprep.subr.mxu0 0.0
    %80 = vmatpush1.msra.mxu0 0.0
    %81 = vmatprep.subr.mxu0 0.0
    %82 = vmatpush1.msra.mxu0 0.0
    %83 = vmatprep.subr.mxu0 0.0
    %84 = vmatpush1.msra.mxu0 0.0
    %85 = vmatprep.subr.mxu0 0.0
    %86 = vmatpush1.msra.mxu0 0.0
    %87 = vmatprep.subr.mxu0 0.0
    %88 = vmatpush1.msra.mxu0 0.0
    %89 = vmatprep.subr.mxu0 0.0
    %90 = vmatpush1.msra.mxu0 0.0
    %91 = vmatprep.subr.mxu0 0.0
    %92 = vmatpush1.msra.mxu0 0.0
    %93 = vmatprep.subr.mxu0 0.0
    %94 = vmatpush1.msra.mxu0 0.0
    %95 = vmatprep.subr.mxu0 0.0
    %96 = vmatpush1.msra.mxu0 0.0
    %97 = vmatprep.subr.mxu0 0.0
    %98 = vmatpush1.msra.mxu0 0.0
    %99 = vmatprep.subr.mxu0 0.0
    %100 = vmatpush1.msra.mxu0 0.0
    %101 = vmatprep.subr.mxu0 0.0
    %102 = vmatpush1.msra.mxu0 0.0
    %103 = vmatprep.subr.mxu0 0.0
    %104 = vmatpush1.msra.mxu0 0.0
    %105 = vmatprep.subr.mxu0 0.0
    %106 = vmatpush1.msra.mxu0 0.0
    %107 = vmatprep.subr.mxu0 0.0
    %108 = vmatpush1.msra.mxu0 0.0
    %109 = vmatprep.subr.mxu0 0.0
    %110 = vmatpush1.msra.mxu0 0.0
    %111 = vmatprep.subr.mxu0 0.0
    %112 = vmatpush1.msra.mxu0 0.0
    %113 = vmatprep.subr.mxu0 0.0
    %114 = vmatpush1.msra.mxu0 0.0
    %115 = vmatprep.subr.mxu0 0.0
    %116 = vmatpush1.msra.mxu0 0.0
    %117 = vmatprep.subr.mxu0 0.0
    %118 = vmatpush1.msra.mxu0 0.0
    %119 = vmatprep.subr.mxu0 0.0
    %120 = vmatpush1.msra.mxu0 0.0
    %121 = vmatprep.subr.mxu0 0.0
    %122 = vmatpush1.msra.mxu0 0.0
    %123 = vmatprep.subr.mxu0 0.0
    %124 = vmatpush1.msra.mxu0 0.0
    %125 = vmatprep.subr.mxu0 0.0
    %126 = vmatpush1.msra.mxu0 0.0
    %127 = vmatprep.subr.mxu0 0.0
    %128 = vmatpush1.msra.mxu0 0.0
    %129 = vmatprep.subr.mxu0 0.0
    %130 = vmatpush1.msra.mxu0 0.0
    %131 = vmatprep.subr.mxu0 0.0
    %132 = vmatpush1.msra.mxu0 0.0
    %133 = vmatprep.subr.mxu0 0.0
    %134 = vmatpush1.msra.mxu0 0.0
    %135 = vmatprep.mubr.f32.mxu0 0.0
    %136 = vmatmul.mubr.f32.gmra.mrb[0].mxu0 %v69
    %v137 = vpop.f32.mrb[0].mxu0
    %v138 = vadd.f32 0.0, %v137
    %v139 = vpop.f32.mrb[0].mxu0
    %140 = vdwg.mxu0
    %142 = vrot.lane.b32.xlu0 %v138, 32
    %v143 = vpop.permute.xlu0 %142
    %v145 = vsel %vm62, %v65, %v143
    %v146 = vld [vmem:[%s3] sm:$0xff]
    %v147 = vld [vmem:[%s3 + $0x8] sm:$0xff]
    %v148 = vld [vmem:[%s3 + $0x10] sm:$0xff]
    %v149 = vld [vmem:[%s3 + $0x18] sm:$0xff]
    %v150 = vld [vmem:[%s3 + $0x20] sm:$0xff]
    %v151 = vld [vmem:[%s3 + $0x28] sm:$0xff]
    %v152 = vld [vmem:[%s3 + $0x30] sm:$0xff]
    %v153 = vld [vmem:[%s3 + $0x38] sm:$0xff]
    %v154 = vld [vmem:[%s4] sm:$0x1]
    %v156 = vlaneseq
    %v157 = vshrl.u32 %v156, 7
    %v158 = vsub.s32 0, %v157
    %v159 = vrot.slane %v154, %v158
    %vm161 = vcmask 523264
    %v163 = vsel %vm161, %v145, 0
    %165 = vmatprep.subr.mxu0 0.0
    %166 = vmatpush1.msra.mxu0 %v146
    %167 = vmatprep.subr.mxu0 0.0
    %168 = vmatpush1.msra.mxu0 %v147
    %169 = vmatprep.subr.mxu0 0.0
    %170 = vmatpush1.msra.mxu0 %v148
    %171 = vmatprep.subr.mxu0 0.0
    %172 = vmatpush1.msra.mxu0 %v149
    %173 = vmatprep.subr.mxu0 0.0
    %174 = vmatpush1.msra.mxu0 %v150
    %175 = vmatprep.subr.mxu0 0.0
    %176 = vmatpush1.msra.mxu0 %v151
    %177 = vmatprep.subr.mxu0 0.0
    %178 = vmatpush1.msra.mxu0 %v152
    %179 = vmatprep.subr.mxu0 0.0
    %180 = vmatpush1.msra.mxu0 %v153
    %181 = vmatprep.subr.mxu0 0.0
    %182 = vmatpush1.msra.mxu0 0.0
    %183 = vmatprep.subr.mxu0 0.0
    %184 = vmatpush1.msra.mxu0 0.0
    %185 = vmatprep.subr.mxu0 0.0
    %186 = vmatpush1.msra.mxu0 0.0
    %187 = vmatprep.subr.mxu0 0.0
    %188 = vmatpush1.msra.mxu0 0.0
    %189 = vmatprep.subr.mxu0 0.0
    %190 = vmatpush1.msra.mxu0 0.0
    %191 = vmatprep.subr.mxu0 0.0
    %192 = vmatpush1.msra.mxu0 0.0
    %193 = vmatprep.subr.mxu0 0.0
    %194 = vmatpush1.msra.mxu0 0.0
    %195 = vmatprep.subr.mxu0 0.0
    %196 = vmatpush1.msra.mxu0 0.0
    %197 = vmatprep.subr.mxu0 0.0
    %198 = vmatpush1.msra.mxu0 0.0
    %199 = vmatprep.subr.mxu0 0.0
    %200 = vmatpush1.msra.mxu0 0.0
    %201 = vmatprep.subr.mxu0 0.0
    %202 = vmatpush1.msra.mxu0 0.0
    %203 = vmatprep.subr.mxu0 0.0
    %204 = vmatpush1.msra.mxu0 0.0
    %205 = vmatprep.subr.mxu0 0.0
    %206 = vmatpush1.msra.mxu0 0.0
    %207 = vmatprep.subr.mxu0 0.0
    %208 = vmatpush1.msra.mxu0 0.0
    %209 = vmatprep.subr.mxu0 0.0
    %210 = vmatpush1.msra.mxu0 0.0
    %211 = vmatprep.subr.mxu0 0.0
    %212 = vmatpush1.msra.mxu0 0.0
    %213 = vmatprep.subr.mxu0 0.0
    %214 = vmatpush1.msra.mxu0 0.0
    %215 = vmatprep.subr.mxu0 0.0
    %216 = vmatpush1.msra.mxu0 0.0
    %217 = vmatprep.subr.mxu0 0.0
    %218 = vmatpush1.msra.mxu0 0.0
    %219 = vmatprep.subr.mxu0 0.0
    %220 = vmatpush1.msra.mxu0 0.0
    %221 = vmatprep.subr.mxu0 0.0
    %222 = vmatpush1.msra.mxu0 0.0
    %223 = vmatprep.subr.mxu0 0.0
    %224 = vmatpush1.msra.mxu0 0.0
    %225 = vmatprep.subr.mxu0 0.0
    %226 = vmatpush1.msra.mxu0 0.0
    %227 = vmatprep.subr.mxu0 0.0
    %228 = vmatpush1.msra.mxu0 0.0
    %229 = vmatprep.mubr.f32.mxu0 0.0
    %230 = vmatmul.mubr.f32.gmra.mrb[0].mxu0 %v163
    %v231 = vpop.f32.mrb[0].mxu0
    %v232 = vadd.f32 %v159, %v231
    %v233 = vpop.f32.mrb[0].mxu0
    %234 = vdwg.mxu0
    %v235 = vmax.f32 %v232, 0.0
    %v236 = vld [vmem:[%s5] sm:$0xff]
    %v237 = vld [vmem:[%s5 + $0x8] sm:$0xff]
    %v238 = vld [vmem:[%s5 + $0x10] sm:$0xff]
    %v239 = vld [vmem:[%s5 + $0x18] sm:$0xff]
    %v240 = vld [vmem:[%s6] sm:$0x1]
    %v242 = vlaneseq
    %v243 = vshrl.u32 %v242, 7
    %v244 = vsub.s32 0, %v243
    %v245 = vrot.slane %v240, %v244
    %v248 = vsel %vm62, %v235, 0
    %250 = vmatprep.subr.mxu0 0.0
    %251 = vmatpush1.msra.mxu0 %v236
    %252 = vmatprep.subr.mxu0 0.0
    %253 = vmatpush1.msra.mxu0 %v237
    %254 = vmatprep.subr.mxu0 0.0
    %255 = vmatpush1.msra.mxu0 %v238
    %256 = vmatprep.subr.mxu0 0.0
    %257 = vmatpush1.msra.mxu0 %v239
    %258 = vmatprep.subr.mxu0 0.0
    %259 = vmatpush1.msra.mxu0 0.0
    %260 = vmatprep.subr.mxu0 0.0
    %261 = vmatpush1.msra.mxu0 0.0
    %262 = vmatprep.subr.mxu0 0.0
    %263 = vmatpush1.msra.mxu0 0.0
    %264 = vmatprep.subr.mxu0 0.0
    %265 = vmatpush1.msra.mxu0 0.0
    %266 = vmatprep.subr.mxu0 0.0
    %267 = vmatpush1.msra.mxu0 0.0
    %268 = vmatprep.subr.mxu0 0.0
    %269 = vmatpush1.msra.mxu0 0.0
    %270 = vmatprep.subr.mxu0 0.0
    %271 = vmatpush1.msra.mxu0 0.0
    %272 = vmatprep.subr.mxu0 0.0
    %273 = vmatpush1.msra.mxu0 0.0
    %274 = vmatprep.subr.mxu0 0.0
    %275 = vmatpush1.msra.mxu0 0.0
    %276 = vmatprep.subr.mxu0 0.0
    %277 = vmatpush1.msra.mxu0 0.0
    %278 = vmatprep.subr.mxu0 0.0
    %279 = vmatpush1.msra.mxu0 0.0
    %280 = vmatprep.subr.mxu0 0.0
    %281 = vmatpush1.msra.mxu0 0.0
    %282 = vmatprep.subr.mxu0 0.0
    %283 = vmatpush1.msra.mxu0 0.0
    %284 = vmatprep.subr.mxu0 0.0
    %285 = vmatpush1.msra.mxu0 0.0
    %286 = vmatprep.subr.mxu0 0.0
    %287 = vmatpush1.msra.mxu0 0.0
    %288 = vmatprep.subr.mxu0 0.0
    %289 = vmatpush1.msra.mxu0 0.0
    %290 = vmatprep.subr.mxu0 0.0
    %291 = vmatpush1.msra.mxu0 0.0
    %292 = vmatprep.subr.mxu0 0.0
    %293 = vmatpush1.msra.mxu0 0.0
    %294 = vmatprep.subr.mxu0 0.0
    %295 = vmatpush1.msra.mxu0 0.0
    %296 = vmatprep.subr.mxu0 0.0
    %297 = vmatpush1.msra.mxu0 0.0
    %298 = vmatprep.subr.mxu0 0.0
    %299 = vmatpush1.msra.mxu0 0.0
    %300 = vmatprep.subr.mxu0 0.0
    %301 = vmatpush1.msra.mxu0 0.0
    %302 = vmatprep.subr.mxu0 0.0
    %303 = vmatpush1.msra.mxu0 0.0
    %304 = vmatprep.subr.mxu0 0.0
    %305 = vmatpush1.msra.mxu0 0.0
    %306 = vmatprep.subr.mxu0 0.0
    %307 = vmatpush1.msra.mxu0 0.0
    %308 = vmatprep.subr.mxu0 0.0
    %309 = vmatpush1.msra.mxu0 0.0
    %310 = vmatprep.subr.mxu0 0.0
    %311 = vmatpush1.msra.mxu0 0.0
    %312 = vmatprep.subr.mxu0 0.0
    %313 = vmatpush1.msra.mxu0 0.0
    %314 = vmatprep.mubr.f32.mxu0 0.0
    %315 = vmatmul.mubr.f32.gmra.mrb[0].mxu0 %v248
    %v316 = vpop.f32.mrb[0].mxu0
    %v317 = vadd.f32 %v245, %v316
    %v318 = vpop.f32.mrb[0].mxu0
    %319 = vdwg.mxu0
    %v320 = vld [vmem:[%s7] sm:$0x1]
    %v322 = vlaneseq
    %v323 = vshrl.u32 %v322, 7
    %v324 = vsub.s32 0, %v323
    %v325 = vrot.slane %v320, %v324
    %v327 = vmul.f32 %v317, %v325
    %v328 = vsel %vm62, %v327, 0.0
    %329 = vadd.xlane.f32.xlu0 %v328
    %v330 = vpop.xlane.xlu0 %329
    %v331 = vstv %s56
    %v332 = vadd.f32 %v330, %v331
    %334 = vrot.lane.b32.xlu0 %v65, 96
    %v335 = vpop.permute.xlu0 %334
    %v337 = vsel %vm62, %v335, %v138
    %v339 = vsel %vm161, %v337, 0
    %341 = vmatprep.subr.mxu0 0.0
    %342 = vmatpush1.msra.mxu0 %v146
    %343 = vmatprep.subr.mxu0 0.0
    %344 = vmatpush1.msra.mxu0 %v147
    %345 = vmatprep.subr.mxu0 0.0
    %346 = vmatpush1.msra.mxu0 %v148
    %347 = vmatprep.subr.mxu0 0.0
    %348 = vmatpush1.msra.mxu0 %v149
    %349 = vmatprep.subr.mxu0 0.0
    %350 = vmatpush1.msra.mxu0 %v150
    %351 = vmatprep.subr.mxu0 0.0
    %352 = vmatpush1.msra.mxu0 %v151
    %353 = vmatprep.subr.mxu0 0.0
    %354 = vmatpush1.msra.mxu0 %v152
    %355 = vmatprep.subr.mxu0 0.0
    %356 = vmatpush1.msra.mxu0 %v153
    %357 = vmatprep.subr.mxu0 0.0
    %358 = vmatpush1.msra.mxu0 0.0
    %359 = vmatprep.subr.mxu0 0.0
    %360 = vmatpush1.msra.mxu0 0.0
    %361 = vmatprep.subr.mxu0 0.0
    %362 = vmatpush1.msra.mxu0 0.0
    %363 = vmatprep.subr.mxu0 0.0
    %364 = vmatpush1.msra.mxu0 0.0
    %365 = vmatprep.subr.mxu0 0.0
    %366 = vmatpush1.msra.mxu0 0.0
    %367 = vmatprep.subr.mxu0 0.0
    %368 = vmatpush1.msra.mxu0 0.0
    %369 = vmatprep.subr.mxu0 0.0
    %370 = vmatpush1.msra.mxu0 0.0
    %371 = vmatprep.subr.mxu0 0.0
    %372 = vmatpush1.msra.mxu0 0.0
    %373 = vmatprep.subr.mxu0 0.0
    %374 = vmatpush1.msra.mxu0 0.0
    %375 = vmatprep.subr.mxu0 0.0
    %376 = vmatpush1.msra.mxu0 0.0
    %377 = vmatprep.subr.mxu0 0.0
    %378 = vmatpush1.msra.mxu0 0.0
    %379 = vmatprep.subr.mxu0 0.0
    %380 = vmatpush1.msra.mxu0 0.0
    %381 = vmatprep.subr.mxu0 0.0
    %382 = vmatpush1.msra.mxu0 0.0
    %383 = vmatprep.subr.mxu0 0.0
    %384 = vmatpush1.msra.mxu0 0.0
    %385 = vmatprep.subr.mxu0 0.0
    %386 = vmatpush1.msra.mxu0 0.0
    %387 = vmatprep.subr.mxu0 0.0
    %388 = vmatpush1.msra.mxu0 0.0
    %389 = vmatprep.subr.mxu0 0.0
    %390 = vmatpush1.msra.mxu0 0.0
    %391 = vmatprep.subr.mxu0 0.0
    %392 = vmatpush1.msra.mxu0 0.0
    %393 = vmatprep.subr.mxu0 0.0
    %394 = vmatpush1.msra.mxu0 0.0
    %395 = vmatprep.subr.mxu0 0.0
    %396 = vmatpush1.msra.mxu0 0.0
    %397 = vmatprep.subr.mxu0 0.0
    %398 = vmatpush1.msra.mxu0 0.0
    %399 = vmatprep.subr.mxu0 0.0
    %400 = vmatpush1.msra.mxu0 0.0
    %401 = vmatprep.subr.mxu0 0.0
    %402 = vmatpush1.msra.mxu0 0.0
    %403 = vmatprep.subr.mxu0 0.0
    %404 = vmatpush1.msra.mxu0 0.0
    %405 = vmatprep.mubr.f32.mxu0 0.0
    %406 = vmatmul.mubr.f32.gmra.mrb[0].mxu0 %v339
    %v407 = vpop.f32.mrb[0].mxu0
    %v408 = vadd.f32 %v159, %v407
    %v409 = vpop.f32.mrb[0].mxu0
    %410 = vdwg.mxu0
    %v411 = vmax.f32 %v408, 0.0
    %v413 = vsel %vm62, %v411, 0
    %415 = vmatprep.subr.mxu0 0.0
    %416 = vmatpush1.msra.mxu0 %v236
    %417 = vmatprep.subr.mxu0 0.0
    %418 = vmatpush1.msra.mxu0 %v237
    %419 = vmatprep.subr.mxu0 0.0
    %420 = vmatpush1.msra.mxu0 %v238
    %421 = vmatprep.subr.mxu0 0.0
    %422 = vmatpush1.msra.mxu0 %v239
    %423 = vmatprep.subr.mxu0 0.0
    %424 = vmatpush1.msra.mxu0 0.0
    %425 = vmatprep.subr.mxu0 0.0
    %426 = vmatpush1.msra.mxu0 0.0
    %427 = vmatprep.subr.mxu0 0.0
    %428 = vmatpush1.msra.mxu0 0.0
    %429 = vmatprep.subr.mxu0 0.0
    %430 = vmatpush1.msra.mxu0 0.0
    %431 = vmatprep.subr.mxu0 0.0
    %432 = vmatpush1.msra.mxu0 0.0
    %433 = vmatprep.subr.mxu0 0.0
    %434 = vmatpush1.msra.mxu0 0.0
    %435 = vmatprep.subr.mxu0 0.0
    %436 = vmatpush1.msra.mxu0 0.0
    %437 = vmatprep.subr.mxu0 0.0
    %438 = vmatpush1.msra.mxu0 0.0
    %439 = vmatprep.subr.mxu0 0.0
    %440 = vmatpush1.msra.mxu0 0.0
    %441 = vmatprep.subr.mxu0 0.0
    %442 = vmatpush1.msra.mxu0 0.0
    %443 = vmatprep.subr.mxu0 0.0
    %444 = vmatpush1.msra.mxu0 0.0
    %445 = vmatprep.subr.mxu0 0.0
    %446 = vmatpush1.msra.mxu0 0.0
    %447 = vmatprep.subr.mxu0 0.0
    %448 = vmatpush1.msra.mxu0 0.0
    %449 = vmatprep.subr.mxu0 0.0
    %450 = vmatpush1.msra.mxu0 0.0
    %451 = vmatprep.subr.mxu0 0.0
    %452 = vmatpush1.msra.mxu0 0.0
    %453 = vmatprep.subr.mxu0 0.0
    %454 = vmatpush1.msra.mxu0 0.0
    %455 = vmatprep.subr.mxu0 0.0
    %456 = vmatpush1.msra.mxu0 0.0
    %457 = vmatprep.subr.mxu0 0.0
    %458 = vmatpush1.msra.mxu0 0.0
    %459 = vmatprep.subr.mxu0 0.0
    %460 = vmatpush1.msra.mxu0 0.0
    %461 = vmatprep.subr.mxu0 0.0
    %462 = vmatpush1.msra.mxu0 0.0
    %463 = vmatprep.subr.mxu0 0.0
    %464 = vmatpush1.msra.mxu0 0.0
    %465 = vmatprep.subr.mxu0 0.0
    %466 = vmatpush1.msra.mxu0 0.0
    %467 = vmatprep.subr.mxu0 0.0
    %468 = vmatpush1.msra.mxu0 0.0
    %469 = vmatprep.subr.mxu0 0.0
    %470 = vmatpush1.msra.mxu0 0.0
    %471 = vmatprep.subr.mxu0 0.0
    %472 = vmatpush1.msra.mxu0 0.0
    %473 = vmatprep.subr.mxu0 0.0
    %474 = vmatpush1.msra.mxu0 0.0
    %475 = vmatprep.subr.mxu0 0.0
    %476 = vmatpush1.msra.mxu0 0.0
    %477 = vmatprep.subr.mxu0 0.0
    %478 = vmatpush1.msra.mxu0 0.0
    %479 = vmatprep.mubr.f32.mxu0 0.0
    %480 = vmatmul.mubr.f32.gmra.mrb[0].mxu0 %v413
    %v481 = vpop.f32.mrb[0].mxu0
    %v482 = vadd.f32 %v245, %v481
    %v483 = vpop.f32.mrb[0].mxu0
    %484 = vdwg.mxu0
    %v485 = vmul.f32 %v482, %v325
    %v486 = vsel %vm62, %v485, 0.0
    %487 = vadd.xlane.f32.xlu0 %v486
    %v488 = vpop.xlane.xlu0 %487
    %v489 = vadd.f32 %v488, %v331
    %vm490 = vcmask 7168
    %v491 = vsel %vm490, %v332, %v489
    %v492 = vlaneseq
    %v493 = vand.u32 %v492, 127
    %v494 = vld [vmem:[%s8] sm:$0xff]
    %495 = vset.pattern.permute.xlu0 0
    %496 = vperm.xlu0 %495, %v494
    %v497 = vpop.permute.xlu0 %496
    %vm498 = vcmp.eq.s32.totalorder %v493, %v497
    %v499 = vsel %vm498, 1, 0
    %v500 = vcvt.s32.f32 %v499
    %v502 = vsel %vm67, %v500, 0
    %504 = vmatprep.subr.mxu0 0.0
    %505 = vmatpush1.msra.mxu0 %v491
    %506 = vmatprep.subr.mxu0 0.0
    %507 = vmatpush1.msra.mxu0 0.0
    %508 = vmatprep.subr.mxu0 0.0
    %509 = vmatpush1.msra.mxu0 0.0
    %510 = vmatprep.subr.mxu0 0.0
    %511 = vmatpush1.msra.mxu0 0.0
    %512 = vmatprep.subr.mxu0 0.0
    %513 = vmatpush1.msra.mxu0 0.0
    %514 = vmatprep.subr.mxu0 0.0
    %515 = vmatpush1.msra.mxu0 0.0
    %516 = vmatprep.subr.mxu0 0.0
    %517 = vmatpush1.msra.mxu0 0.0
    %518 = vmatprep.subr.mxu0 0.0
    %519 = vmatpush1.msra.mxu0 0.0
    %520 = vmatprep.subr.mxu0 0.0
    %521 = vmatpush1.msra.mxu0 0.0
    %522 = vmatprep.subr.mxu0 0.0
    %523 = vmatpush1.msra.mxu0 0.0
    %524 = vmatprep.subr.mxu0 0.0
    %525 = vmatpush1.msra.mxu0 0.0
    %526 = vmatprep.subr.mxu0 0.0
    %527 = vmatpush1.msra.mxu0 0.0
    %528 = vmatprep.subr.mxu0 0.0
    %529 = vmatpush1.msra.mxu0 0.0
    %530 = vmatprep.subr.mxu0 0.0
    %531 = vmatpush1.msra.mxu0 0.0
    %532 = vmatprep.subr.mxu0 0.0
    %533 = vmatpush1.msra.mxu0 0.0
    %534 = vmatprep.subr.mxu0 0.0
    %535 = vmatpush1.msra.mxu0 0.0
    %536 = vmatprep.subr.mxu0 0.0
    %537 = vmatpush1.msra.mxu0 0.0
    %538 = vmatprep.subr.mxu0 0.0
    %539 = vmatpush1.msra.mxu0 0.0
    %540 = vmatprep.subr.mxu0 0.0
    %541 = vmatpush1.msra.mxu0 0.0
    %542 = vmatprep.subr.mxu0 0.0
    %543 = vmatpush1.msra.mxu0 0.0
    %544 = vmatprep.subr.mxu0 0.0
    %545 = vmatpush1.msra.mxu0 0.0
    %546 = vmatprep.subr.mxu0 0.0
    %547 = vmatpush1.msra.mxu0 0.0
    %548 = vmatprep.subr.mxu0 0.0
    %549 = vmatpush1.msra.mxu0 0.0
    %550 = vmatprep.subr.mxu0 0.0
    %551 = vmatpush1.msra.mxu0 0.0
    %552 = vmatprep.subr.mxu0 0.0
    %553 = vmatpush1.msra.mxu0 0.0
    %554 = vmatprep.subr.mxu0 0.0
    %555 = vmatpush1.msra.mxu0 0.0
    %556 = vmatprep.subr.mxu0 0.0
    %557 = vmatpush1.msra.mxu0 0.0
    %558 = vmatprep.subr.mxu0 0.0
    %559 = vmatpush1.msra.mxu0 0.0
    %560 = vmatprep.subr.mxu0 0.0
    %561 = vmatpush1.msra.mxu0 0.0
    %562 = vmatprep.subr.mxu0 0.0
    %563 = vmatpush1.msra.mxu0 0.0
    %564 = vmatprep.subr.mxu0 0.0
    %565 = vmatpush1.msra.mxu0 0.0
    %566 = vmatprep.subr.mxu0 0.0
    %567 = vmatpush1.msra.mxu0 0.0
    %568 = vmatprep.mubr.f32.mxu0 0.0
    %569 = vmatmul.mubr.f32.gmra.mrb[0].mxu0 %v502
    %v570 = vpop.f32.mrb[0].mxu0
    %v571 = vadd.f32 0.0, %v570
    %v572 = vpop.f32.mrb[0].mxu0
    %573 = vdwg.mxu0
    %v574 = vand.u32 2147483647, %v571
    %vm575 = vcmp.eq.f32.partialorder %v574, 0.0
    %v576 = vsel %vm575, 1e+10, %v574
    %v577 = vadd.f32 %v571, 1e-10
    %vm578 = vcmp.lt.f32.partialorder %v577, 0.0
    %v579 = vsel %vm578, -1.0, 1.0
    %580 = vset.pattern.permute.xlu0 1
    %581 = vperm.xlu0 %580, %v494
    %v582 = vpop.permute.xlu0 %581
    %vm583 = vcmp.eq.s32.totalorder %v493, %v582
    %v584 = vsel %vm583, 1, 0
    %v585 = vcvt.s32.f32 %v584
    %v587 = vsel %vm67, %v585, 0
    %589 = vmatprep.subr.mxu0 0.0
    %590 = vmatpush1.msra.mxu0 %v491
    %591 = vmatprep.subr.mxu0 0.0
    %592 = vmatpush1.msra.mxu0 0.0
    %593 = vmatprep.subr.mxu0 0.0
    %594 = vmatpush1.msra.mxu0 0.0
    %595 = vmatprep.subr.mxu0 0.0
    %596 = vmatpush1.msra.mxu0 0.0
    %597 = vmatprep.subr.mxu0 0.0
    %598 = vmatpush1.msra.mxu0 0.0
    %599 = vmatprep.subr.mxu0 0.0
    %600 = vmatpush1.msra.mxu0 0.0
    %601 = vmatprep.subr.mxu0 0.0
    %602 = vmatpush1.msra.mxu0 0.0
    %603 = vmatprep.subr.mxu0 0.0
    %604 = vmatpush1.msra.mxu0 0.0
    %605 = vmatprep.subr.mxu0 0.0
    %606 = vmatpush1.msra.mxu0 0.0
    %607 = vmatprep.subr.mxu0 0.0
    %608 = vmatpush1.msra.mxu0 0.0
    %609 = vmatprep.subr.mxu0 0.0
    %610 = vmatpush1.msra.mxu0 0.0
    %611 = vmatprep.subr.mxu0 0.0
    %612 = vmatpush1.msra.mxu0 0.0
    %613 = vmatprep.subr.mxu0 0.0
    %614 = vmatpush1.msra.mxu0 0.0
    %615 = vmatprep.subr.mxu0 0.0
    %616 = vmatpush1.msra.mxu0 0.0
    %617 = vmatprep.subr.mxu0 0.0
    %618 = vmatpush1.msra.mxu0 0.0
    %619 = vmatprep.subr.mxu0 0.0
    %620 = vmatpush1.msra.mxu0 0.0
    %621 = vmatprep.subr.mxu0 0.0
    %622 = vmatpush1.msra.mxu0 0.0
    %623 = vmatprep.subr.mxu0 0.0
    %624 = vmatpush1.msra.mxu0 0.0
    %625 = vmatprep.subr.mxu0 0.0
    %626 = vmatpush1.msra.mxu0 0.0
    %627 = vmatprep.subr.mxu0 0.0
    %628 = vmatpush1.msra.mxu0 0.0
    %629 = vmatprep.subr.mxu0 0.0
    %630 = vmatpush1.msra.mxu0 0.0
    %631 = vmatprep.subr.mxu0 0.0
    %632 = vmatpush1.msra.mxu0 0.0
    %633 = vmatprep.subr.mxu0 0.0
    %634 = vmatpush1.msra.mxu0 0.0
    %635 = vmatprep.subr.mxu0 0.0
    %636 = vmatpush1.msra.mxu0 0.0
    %637 = vmatprep.subr.mxu0 0.0
    %638 = vmatpush1.msra.mxu0 0.0
    %639 = vmatprep.subr.mxu0 0.0
    %640 = vmatpush1.msra.mxu0 0.0
    %641 = vmatprep.subr.mxu0 0.0
    %642 = vmatpush1.msra.mxu0 0.0
    %643 = vmatprep.subr.mxu0 0.0
    %644 = vmatpush1.msra.mxu0 0.0
    %645 = vmatprep.subr.mxu0 0.0
    %646 = vmatpush1.msra.mxu0 0.0
    %647 = vmatprep.subr.mxu0 0.0
    %648 = vmatpush1.msra.mxu0 0.0
    %649 = vmatprep.subr.mxu0 0.0
    %650 = vmatpush1.msra.mxu0 0.0
    %651 = vmatprep.subr.mxu0 0.0
    %652 = vmatpush1.msra.mxu0 0.0
    %653 = vmatprep.mubr.f32.mxu0 0.0
    %654 = vmatmul.mubr.f32.gmra.mrb[0].mxu0 %v587
    %v655 = vpop.f32.mrb[0].mxu0
    %v656 = vadd.f32 0.0, %v655
    %v657 = vpop.f32.mrb[0].mxu0
    %658 = vdwg.mxu0
    %v659 = vand.u32 2147483647, %v656
    %vm660 = vcmp.eq.f32.partialorder %v659, 0.0
    %v661 = vsel %vm660, 1e+10, %v659
    %v662 = vadd.f32 %v656, 1e-10
    %vm663 = vcmp.lt.f32.partialorder %v662, 0.0
    %v664 = vsel %vm663, -1.0, 1.0
    %v665 = vmin.f32 %v576, %v661
    %v666 = vmul.f32 %v579, %v664
    %667 = vset.pattern.permute.xlu0 2
    %668 = vperm.xlu0 %667, %v494
    %v669 = vpop.permute.xlu0 %668
    %vm670 = vcmp.eq.s32.totalorder %v493, %v669
    %v671 = vsel %vm670, 1, 0
    %v672 = vcvt.s32.f32 %v671
    %v674 = vsel %vm67, %v672, 0
    %676 = vmatprep.subr.mxu0 0.0
    %677 = vmatpush1.msra.mxu0 %v491
    %678 = vmatprep.subr.mxu0 0.0
    %679 = vmatpush1.msra.mxu0 0.0
    %680 = vmatprep.subr.mxu0 0.0
    %681 = vmatpush1.msra.mxu0 0.0
    %682 = vmatprep.subr.mxu0 0.0
    %683 = vmatpush1.msra.mxu0 0.0
    %684 = vmatprep.subr.mxu0 0.0
    %685 = vmatpush1.msra.mxu0 0.0
    %686 = vmatprep.subr.mxu0 0.0
    %687 = vmatpush1.msra.mxu0 0.0
    %688 = vmatprep.subr.mxu0 0.0
    %689 = vmatpush1.msra.mxu0 0.0
    %690 = vmatprep.subr.mxu0 0.0
    %691 = vmatpush1.msra.mxu0 0.0
    %692 = vmatprep.subr.mxu0 0.0
    %693 = vmatpush1.msra.mxu0 0.0
    %694 = vmatprep.subr.mxu0 0.0
    %695 = vmatpush1.msra.mxu0 0.0
    %696 = vmatprep.subr.mxu0 0.0
    %697 = vmatpush1.msra.mxu0 0.0
    %698 = vmatprep.subr.mxu0 0.0
    %699 = vmatpush1.msra.mxu0 0.0
    %700 = vmatprep.subr.mxu0 0.0
    %701 = vmatpush1.msra.mxu0 0.0
    %702 = vmatprep.subr.mxu0 0.0
    %703 = vmatpush1.msra.mxu0 0.0
    %704 = vmatprep.subr.mxu0 0.0
    %705 = vmatpush1.msra.mxu0 0.0
    %706 = vmatprep.subr.mxu0 0.0
    %707 = vmatpush1.msra.mxu0 0.0
    %708 = vmatprep.subr.mxu0 0.0
    %709 = vmatpush1.msra.mxu0 0.0
    %710 = vmatprep.subr.mxu0 0.0
    %711 = vmatpush1.msra.mxu0 0.0
    %712 = vmatprep.subr.mxu0 0.0
    %713 = vmatpush1.msra.mxu0 0.0
    %714 = vmatprep.subr.mxu0 0.0
    %715 = vmatpush1.msra.mxu0 0.0
    %716 = vmatprep.subr.mxu0 0.0
    %717 = vmatpush1.msra.mxu0 0.0
    %718 = vmatprep.subr.mxu0 0.0
    %719 = vmatpush1.msra.mxu0 0.0
    %720 = vmatprep.subr.mxu0 0.0
    %721 = vmatpush1.msra.mxu0 0.0
    %722 = vmatprep.subr.mxu0 0.0
    %723 = vmatpush1.msra.mxu0 0.0
    %724 = vmatprep.subr.mxu0 0.0
    %725 = vmatpush1.msra.mxu0 0.0
    %726 = vmatprep.subr.mxu0 0.0
    %727 = vmatpush1.msra.mxu0 0.0
    %728 = vmatprep.subr.mxu0 0.0
    %729 = vmatpush1.msra.mxu0 0.0
    %730 = vmatprep.subr.mxu0 0.0
    %731 = vmatpush1.msra.mxu0 0.0
    %732 = vmatprep.subr.mxu0 0.0
    %733 = vmatpush1.msra.mxu0 0.0
    %734 = vmatprep.subr.mxu0 0.0
    %735 = vmatpush1.msra.mxu0 0.0
    %736 = vmatprep.subr.mxu0 0.0
    %737 = vmatpush1.msra.mxu0 0.0
    %738 = vmatprep.subr.mxu0 0.0
    %739 = vmatpush1.msra.mxu0 0.0
    %740 = vmatprep.mubr.f32.mxu0 0.0
    %741 = vmatmul.mubr.f32.gmra.mrb[0].mxu0 %v674
    %v742 = vpop.f32.mrb[0].mxu0
    %v743 = vadd.f32 0.0, %v742
    %v744 = vpop.f32.mrb[0].mxu0
    %745 = vdwg.mxu0
    %v746 = vand.u32 2147483647, %v743
    %vm747 = vcmp.eq.f32.partialorder %v746, 0.0
    %v748 = vsel %vm747, 1e+10, %v746
    %v749 = vadd.f32 %v743, 1e-10
    %vm750 = vcmp.lt.f32.partialorder %v749, 0.0
    %v751 = vsel %vm750, -1.0, 1.0
    %v752 = vmin.f32 %v665, %v748
    %v753 = vmul.f32 %v666, %v751
    %754 = vset.pattern.permute.xlu0 3
    %755 = vperm.xlu0 %754, %v494
    %v756 = vpop.permute.xlu0 %755
    %vm757 = vcmp.eq.s32.totalorder %v493, %v756
    %v758 = vsel %vm757, 1, 0
    %v759 = vcvt.s32.f32 %v758
    %v761 = vsel %vm67, %v759, 0
    %763 = vmatprep.subr.mxu0 0.0
    %764 = vmatpush1.msra.mxu0 %v491
    %765 = vmatprep.subr.mxu0 0.0
    %766 = vmatpush1.msra.mxu0 0.0
    %767 = vmatprep.subr.mxu0 0.0
    %768 = vmatpush1.msra.mxu0 0.0
    %769 = vmatprep.subr.mxu0 0.0
    %770 = vmatpush1.msra.mxu0 0.0
    %771 = vmatprep.subr.mxu0 0.0
    %772 = vmatpush1.msra.mxu0 0.0
    %773 = vmatprep.subr.mxu0 0.0
    %774 = vmatpush1.msra.mxu0 0.0
    %775 = vmatprep.subr.mxu0 0.0
    %776 = vmatpush1.msra.mxu0 0.0
    %777 = vmatprep.subr.mxu0 0.0
    %778 = vmatpush1.msra.mxu0 0.0
    %779 = vmatprep.subr.mxu0 0.0
    %780 = vmatpush1.msra.mxu0 0.0
    %781 = vmatprep.subr.mxu0 0.0
    %782 = vmatpush1.msra.mxu0 0.0
    %783 = vmatprep.subr.mxu0 0.0
    %784 = vmatpush1.msra.mxu0 0.0
    %785 = vmatprep.subr.mxu0 0.0
    %786 = vmatpush1.msra.mxu0 0.0
    %787 = vmatprep.subr.mxu0 0.0
    %788 = vmatpush1.msra.mxu0 0.0
    %789 = vmatprep.subr.mxu0 0.0
    %790 = vmatpush1.msra.mxu0 0.0
    %791 = vmatprep.subr.mxu0 0.0
    %792 = vmatpush1.msra.mxu0 0.0
    %793 = vmatprep.subr.mxu0 0.0
    %794 = vmatpush1.msra.mxu0 0.0
    %795 = vmatprep.subr.mxu0 0.0
    %796 = vmatpush1.msra.mxu0 0.0
    %797 = vmatprep.subr.mxu0 0.0
    %798 = vmatpush1.msra.mxu0 0.0
    %799 = vmatprep.subr.mxu0 0.0
    %800 = vmatpush1.msra.mxu0 0.0
    %801 = vmatprep.subr.mxu0 0.0
    %802 = vmatpush1.msra.mxu0 0.0
    %803 = vmatprep.subr.mxu0 0.0
    %804 = vmatpush1.msra.mxu0 0.0
    %805 = vmatprep.subr.mxu0 0.0
    %806 = vmatpush1.msra.mxu0 0.0
    %807 = vmatprep.subr.mxu0 0.0
    %808 = vmatpush1.msra.mxu0 0.0
    %809 = vmatprep.subr.mxu0 0.0
    %810 = vmatpush1.msra.mxu0 0.0
    %811 = vmatprep.subr.mxu0 0.0
    %812 = vmatpush1.msra.mxu0 0.0
    %813 = vmatprep.subr.mxu0 0.0
    %814 = vmatpush1.msra.mxu0 0.0
    %815 = vmatprep.subr.mxu0 0.0
    %816 = vmatpush1.msra.mxu0 0.0
    %817 = vmatprep.subr.mxu0 0.0
    %818 = vmatpush1.msra.mxu0 0.0
    %819 = vmatprep.subr.mxu0 0.0
    %820 = vmatpush1.msra.mxu0 0.0
    %821 = vmatprep.subr.mxu0 0.0
    %822 = vmatpush1.msra.mxu0 0.0
    %823 = vmatprep.subr.mxu0 0.0
    %824 = vmatpush1.msra.mxu0 0.0
    %825 = vmatprep.subr.mxu0 0.0
    %826 = vmatpush1.msra.mxu0 0.0
    %827 = vmatprep.mubr.f32.mxu0 0.0
    %828 = vmatmul.mubr.f32.gmra.mrb[0].mxu0 %v761
    %v829 = vpop.f32.mrb[0].mxu0
    %v830 = vadd.f32 0.0, %v829
    %v831 = vpop.f32.mrb[0].mxu0
    %832 = vdwg.mxu0
    %v833 = vand.u32 2147483647, %v830
    %vm834 = vcmp.eq.f32.partialorder %v833, 0.0
    %v835 = vsel %vm834, 1e+10, %v833
    %v836 = vadd.f32 %v830, 1e-10
    %vm837 = vcmp.lt.f32.partialorder %v836, 0.0
    %v838 = vsel %vm837, -1.0, 1.0
    %v839 = vmin.f32 %v752, %v835
    %v840 = vmul.f32 %v753, %v838
    %v841 = vstv %s55
    %v842 = vmul.f32 %v841, %v839
    %v843 = vmul.f32 %v842, %v840
    %v844 = vld [vmem:[%s9] sm:$0x1]
    %846 = vset.pattern.permute.xlu0 0
    %847 = vperm.xlu0 %846, %v843
    %v848 = vpop.permute.xlu0 %847
    %v851 = vlaneseq
    %v852 = vshrl.u32 %v851, 7
    %v853 = vsub.s32 0, %v852
    %v854 = vrot.slane %v844, %v853
    %v856 = vmul.f32 %v848, %v854
    %v857 = vadd.f32 %v317, %v856
    %v858 = vld [vmem:[%s10] sm:$0x1]
    %v860 = vlaneseq
    %v861 = vshrl.u32 %v860, 7
    %v862 = vsub.s32 0, %v861
    %v863 = vrot.slane %v858, %v862
    %v865 = vadd.f32 %v857, %v863
    %866 = vset.pattern.permute.xlu0 1
    %867 = vperm.xlu0 %866, %v843
    %v868 = vpop.permute.xlu0 %867
    %v870 = vmul.f32 %v868, %v854
    %v871 = vadd.f32 %v482, %v870
    %v872 = vadd.f32 %v871, %v863
    %874 = vrot.lane.b32.xlu0 %v872, 32
    %v875 = vpop.permute.xlu0 %874
    %v877 = vsel %vm62, %v865, %v875
    %878 = vst.msk [vmem:[#allocation5] sm:$0xff] %vm161, %v877
    // Predicated region
    $region54: #{tpu_custom_call.1} parent=1 // pred_check
      _
    $region55: #{tpu_custom_call.1} parent=1 // pred_check_branch
      %880 = sbr.rel (0) target = $region57
    $region56: #{tpu_custom_call.1} parent=1 // pred_region
      %s882 = ssub.s32 128, 128
      %883 = vsyncadd [#allocation3], %s882
      %s885 = sshll.u32 [#allocation5], 4
      %s886 = int_to_ptr.vmem [resolvable:$true] %s885
      %888 = dma.vmem_to_hbm [thread:$0]  %s886, 128, %s12, [#allocation3]
    $region57: #{tpu_custom_call.1} parent=1 // pred_fallthru
      _
    // Predicated region
    $region58: #{tpu_custom_call.1} parent=1 // pred_check
      _
    $region59: #{tpu_custom_call.1} parent=1 // pred_check_branch
      %890 = sbr.rel (0) target = $region61
    $region60: #{tpu_custom_call.1} parent=1 // pred_region
      %891 = dma.done [#allocation3], 128
    $region61: #{tpu_custom_call.1} parent=1 // pred_fallthru
      _
    %892 = vsyncpa [#allocation3], 1
    %893 = vsyncpa [#allocation4], 1

</llo_original>
